<compile_context>
chip_gen: v6e
topology: v6e:2x2x1
jax: 0.10.0
libtpu: 0.0.40
codegen_flags: <defaults>
</compile_context>

<pallas_src>
import functools

import jax
import jax.numpy as jnp
from jax.experimental import pallas as pl
from jax.experimental.pallas import tpu as pltpu


_LANE = 128                # TPU lane width; table/output last dim padded to this
_SUBLANE = 8               # sublane multiple for row padding / row groups
_MAX_RESIDENT_CHUNK = 64   # rows gathered per grid step on the VMEM-resident path
_MAX_DMA_ROWS = 32         # rows gathered per grid step on the HBM DMA-gather path
_DMA_BUFFER_DEPTH = 3      # pipeline depth for the per-row gather DMAs


def _round_up(x, m):
    return -(-x // m) * m


@functools.lru_cache(maxsize=None)
def _vmem_capacity_bytes():
    """Physical VMEM per core (64 MiB on v7x, 128 MiB on v5e/v6e)."""
    try:
        return int(pltpu.get_tpu_info().vmem_capacity_bytes)
    except Exception:
        return 64 * 1024 * 1024  # conservative default (v7x-sized)


# ---------------------------------------------------------------------------
# Path 1: VMEM-resident table, in-kernel gather
# ---------------------------------------------------------------------------
def _make_resident_kernel(chunk_rows):
    def kernel(ids_ref, table_ref, o_ref):
        # ids_ref   : (N,) int32 in SMEM (scalar prefetch)
        # table_ref : (Vp, Ep) f32 -- whole table resident in VMEM
        # o_ref     : (chunk_rows, Ep) f32 output tile
        base = pl.program_id(0) * chunk_rows
        for k in range(chunk_rows):                   # static unroll
            idx = ids_ref[base + k]                   # SMEM scalar read
            o_ref[pl.ds(k, 1), :] = table_ref[pl.ds(idx, 1), :]   # VMEM gather

    return kernel


# ---------------------------------------------------------------------------
# Path 2: HBM DMA gather via data-dependent index_maps (fallback)
# ---------------------------------------------------------------------------
def _make_dma_gather_kernel(rows_per_step):
    def kernel(ids_ref, *refs):
        # refs[:R]  : R x (1, Ep) f32 VMEM tiles -- the gathered table rows
        # refs[R]   : (R, Ep) f32 output tile
        del ids_ref                                   # consumed by the index_maps
        w_refs = refs[:rows_per_step]
        o_ref = refs[rows_per_step]
        for k in range(rows_per_step):
            o_ref[k, :] = w_refs[k][0, :]

    return kernel


@functools.partial(
    jax.jit, static_argnames=("embedding_size", "num_rows", "force_path"))
def embedding_lookup(data, weight_padded, *, embedding_size, num_rows,
                     force_path=None):
    """Pallas equivalent of nn.Embedding(...)(data) using a pre-padded table.

    data          : integer array of any shape (indices into table rows)
    weight_padded : (Vp, Ep) f32 table, Vp % 8 == 0, Ep % 128 == 0
    embedding_size: logical E (<= Ep); output last dim
    num_rows      : logical number of table rows (<= Vp); ids clamped to it
    force_path    : None (auto) | "resident" | "dma"  -- for testing/benchmarks
    returns       : data.shape + (embedding_size,) float32
    """
    orig_shape = data.shape
    vpad, epad = weight_padded.shape

    ids = data.reshape(-1).astype(jnp.int32)
    # torch.nn.Embedding raises on out-of-range ids; we clamp so the
    # data-dependent access can never go out of bounds.
    ids = jnp.clip(ids, 0, num_rows - 1)
    n = ids.shape[0]

    vmem_cap = _vmem_capacity_bytes()
    table_bytes = vpad * epad * 4

    chunk = max(_SUBLANE, min(_MAX_RESIDENT_CHUNK, _round_up(max(n, 1), _SUBLANE)))
    out_block_bytes = chunk * epad * 4
    # Worst-case accounting: table possibly double-buffered by the pipeline,
    # output double-buffered, plus 1 MiB slack; keep it under ~85% of VMEM.
    resident_fits = (2 * table_bytes + 2 * out_block_bytes + (1 << 20)
                     <= int(0.85 * vmem_cap))
    use_resident = resident_fits if force_path is None else (force_path == "resident")

    if use_resident:
        n_total = _round_up(max(n, 1), chunk)
        ids_p = jnp.pad(ids, (0, n_total - n))   # padded ids hit row 0 (zeros)
        n_steps = n_total // chunk

        out = pl.pallas_call(
            _make_resident_kernel(chunk),
            out_shape=jax.ShapeDtypeStruct((n_total, epad), jnp.float32),
            grid_spec=pltpu.PrefetchScalarGridSpec(
                num_scalar_prefetch=1,
                grid=(n_steps,),
                # Whole table as one constant-index block -> fetched once,
                # stays resident in VMEM across the grid.
                in_specs=[pl.BlockSpec((vpad, epad), lambda i, ids_ref: (0, 0))],
                out_specs=pl.BlockSpec((chunk, epad), lambda i, ids_ref: (i, 0)),
            ),
            compiler_params=pltpu.CompilerParams(
                dimension_semantics=("parallel",),       # v7x: split chunks over 2 TCs
                vmem_limit_bytes=int(0.9 * vmem_cap),    # generation-aware limit
            ),
            cost_estimate=pl.CostEstimate(
                flops=0, transcendentals=0,
                bytes_accessed=table_bytes + n_total * epad * 4 + n_total * 4),
        )(ids_p, weight_padded)
    else:
        r = max(_SUBLANE, min(_MAX_DMA_ROWS, _round_up(max(n, 1), _SUBLANE)))
        n_total = _round_up(max(n, 1), r)
        ids_p = jnp.pad(ids, (0, n_total - n))
        n_steps = n_total // r

        def w_spec(k):
            # Each of the R weight specs pulls one table row per grid step; the
            # row index comes from the SMEM-prefetched ids (data-dependent
            # gather).  Buffered(3) keeps extra row DMAs in flight.
            return pl.BlockSpec(
                (1, epad),
                lambda i, ids_ref, k=k: (ids_ref[i * r + k], 0),
                pipeline_mode=pl.Buffered(_DMA_BUFFER_DEPTH),
            )

        out = pl.pallas_call(
            _make_dma_gather_kernel(r),
            out_shape=jax.ShapeDtypeStruct((n_total, epad), jnp.float32),
            grid_spec=pltpu.PrefetchScalarGridSpec(
                num_scalar_prefetch=1,
                grid=(n_steps,),
                in_specs=[w_spec(k) for k in range(r)],
                out_specs=pl.BlockSpec((r, epad), lambda i, ids_ref: (i, 0)),
            ),
            compiler_params=pltpu.CompilerParams(
                dimension_semantics=("parallel",),
                vmem_limit_bytes=min(32 * 1024 * 1024, int(0.9 * vmem_cap)),
            ),
            cost_estimate=pl.CostEstimate(
                flops=0, transcendentals=0,
                bytes_accessed=2 * n_total * epad * 4 + n_total * 4),
        )(ids_p, *([weight_padded] * r))

    # TODO(synk): when 128 % E == 0, pack 128//E gathered rows per physical
    # output row (pltpu.roll) to avoid the 4x lane-padding write + this slice.
    return out[:n, :embedding_size].reshape(*orig_shape, embedding_size)


def _init_table(key, vocab_size, embedding_size):
    """torch.cat([zeros(1,E), U(-0.5/E, 0.5/E) of shape (V,E)]) -> (V+1, E)."""
    lim = 0.5 / embedding_size
    return jnp.concatenate(
        [
            jnp.zeros((1, embedding_size), jnp.float32),
            jax.random.uniform(
                key, (vocab_size, embedding_size), jnp.float32, -lim, lim),
        ],
        axis=0,
    )


def _pad_table(table):
    """Pad once at construction: rows -> multiple of 8, cols -> multiple of 128."""
    v, e = table.shape
    return jnp.pad(table, ((0, _round_up(v, _SUBLANE) - v),
                           (0, _round_up(e, _LANE) - e)))


class Word2VecPallas:
    """JAX/Pallas port of the PyTorch Word2Vec module (forward == forward_i)."""

    def __init__(self, vocab_size, embedding_size, padding_idx, key):
        self.vocab_size = vocab_size
        self.embedding_size = embedding_size
        self.padding_idx = padding_idx  # row 0 is zeros by construction (torch.cat)
        k_i, k_o = jax.random.split(key)
        self.ivectors = _init_table(k_i, vocab_size, embedding_size)  # (V+1, E)
        self.ovectors = _init_table(k_o, vocab_size, embedding_size)  # (V+1, E)
        # Lane/sublane-padded copies built ONCE (not per forward call).
        self._ivectors_padded = _pad_table(self.ivectors)
        self._ovectors_padded = _pad_table(self.ovectors)

    def forward(self, data):
        return self.forward_i(data)

    def forward_i(self, data):
        return embedding_lookup(
            data, self._ivectors_padded,
            embedding_size=self.embedding_size,
            num_rows=self.ivectors.shape[0])

    def forward_o(self, data):
        return embedding_lookup(
            data, self._ovectors_padded,
            embedding_size=self.embedding_size,
            num_rows=self.ovectors.shape[0])


if __name__ == "__main__":
    key = jax.random.PRNGKey(0)
    k_params, k_data = jax.random.split(key)

    vocab_size = 60
    embedding_size = 32
    padding_idx = 0
    batch, seq = 2, 8

    model = Word2VecPallas(vocab_size, embedding_size, padding_idx, k_params)

    # indices in [0, vocab_size] (row 0 == padding / zero row), int32
    data = jax.random.randint(k_data, (batch, seq), 0, vocab_size + 1, jnp.int32)

    # Default path: table is tiny -> VMEM-resident fast path.
    out_i = jax.block_until_ready(model.forward(data))
    out_o = jax.block_until_ready(model.forward_o(data))

    # Also exercise the HBM DMA-gather fallback (taken when the table exceeds
    # the per-generation VMEM budget).
    out_dma = jax.block_until_ready(
        embedding_lookup(
            data, model._ivectors_padded,
            embedding_size=embedding_size,
            num_rows=model.ivectors.shape[0],
            force_path="dma"))

    # reference check against plain JAX take on the unpadded tables
    ref_i = jnp.take(model.ivectors, data, axis=0)
    ref_o = jnp.take(model.ovectors, data, axis=0)
    assert out_i.shape == (batch, seq, embedding_size), out_i.shape
    assert jnp.allclose(out_i, ref_i, atol=1e-6), "forward_i mismatch vs reference"
    assert jnp.allclose(out_o, ref_o, atol=1e-6), "forward_o mismatch vs reference"
    assert jnp.allclose(out_dma, ref_i, atol=1e-6), "DMA-gather path mismatch vs reference"

    print("KERNEL_OK")
</pallas_src>

<mosaic_0001>
module attributes {stable_mosaic.version = 11 : i64} {
  func.func @kernel(%arg0: i32, %arg1: memref<16xi32, #tpu.memory_space<smem>>, %arg2: memref<64x128xf32, #tpu.memory_space<vmem>>, %arg3: memref<16x128xf32, #tpu.memory_space<vmem>>) attributes {dimension_semantics = [#tpu.dimension_semantics<parallel>], iteration_bounds = array<i64: 1>, scalar_prefetch = 1 : i64, scratch_operands = 0 : i64, tpu.core_type = #tpu.core_type<tc>, window_params = [{pipeline_mode = #tpu.pipeline_mode<synchronous>, transform_indices = @transform_0, window_bounds = array<i64: 64, 128>}, {transform_indices = @transform_1, window_bounds = array<i64: 16, 128>}]} {
    %c16_i32 = arith.constant 16 : i32
    %0 = arith.muli %arg0, %c16_i32 : i32
    %c0_i32 = arith.constant 0 : i32
    %1 = arith.addi %0, %c0_i32 : i32
    %2 = arith.index_cast %1 : i32 to index
    %3 = memref.load %arg1[%2] : memref<16xi32, #tpu.memory_space<smem>>
    %4 = arith.index_cast %3 : i32 to index
    %c0 = arith.constant 0 : index
    %5 = vector.load %arg2[%4, %c0] : memref<64x128xf32, #tpu.memory_space<vmem>>, vector<1x128xf32>
    %c0_0 = arith.constant 0 : index
    %c0_1 = arith.constant 0 : index
    %6 = vector.load %arg3[%c0_0, %c0_1] : memref<16x128xf32, #tpu.memory_space<vmem>>, vector<1x128xf32>
    tpu.vector_store %arg3[%c0_0, %c0_1], %5 {strides = array<i32>} : memref<16x128xf32, #tpu.memory_space<vmem>>, vector<1x128xf32>,
    %c1_i32 = arith.constant 1 : i32
    %7 = arith.addi %0, %c1_i32 : i32
    %8 = arith.index_cast %7 : i32 to index
    %9 = memref.load %arg1[%8] : memref<16xi32, #tpu.memory_space<smem>>
    %10 = arith.index_cast %9 : i32 to index
    %c0_2 = arith.constant 0 : index
    %11 = vector.load %arg2[%10, %c0_2] : memref<64x128xf32, #tpu.memory_space<vmem>>, vector<1x128xf32>
    %c1 = arith.constant 1 : index
    %c0_3 = arith.constant 0 : index
    %12 = vector.load %arg3[%c1, %c0_3] : memref<16x128xf32, #tpu.memory_space<vmem>>, vector<1x128xf32>
    tpu.vector_store %arg3[%c1, %c0_3], %11 {strides = array<i32>} : memref<16x128xf32, #tpu.memory_space<vmem>>, vector<1x128xf32>,
    %c2_i32 = arith.constant 2 : i32
    %13 = arith.addi %0, %c2_i32 : i32
    %14 = arith.index_cast %13 : i32 to index
    %15 = memref.load %arg1[%14] : memref<16xi32, #tpu.memory_space<smem>>
    %16 = arith.index_cast %15 : i32 to index
    %c0_4 = arith.constant 0 : index
    %17 = vector.load %arg2[%16, %c0_4] : memref<64x128xf32, #tpu.memory_space<vmem>>, vector<1x128xf32>
    %c2 = arith.constant 2 : index
    %c0_5 = arith.constant 0 : index
    %18 = vector.load %arg3[%c2, %c0_5] : memref<16x128xf32, #tpu.memory_space<vmem>>, vector<1x128xf32>
    tpu.vector_store %arg3[%c2, %c0_5], %17 {strides = array<i32>} : memref<16x128xf32, #tpu.memory_space<vmem>>, vector<1x128xf32>,
    %c3_i32 = arith.constant 3 : i32
    %19 = arith.addi %0, %c3_i32 : i32
    %20 = arith.index_cast %19 : i32 to index
    %21 = memref.load %arg1[%20] : memref<16xi32, #tpu.memory_space<smem>>
    %22 = arith.index_cast %21 : i32 to index
    %c0_6 = arith.constant 0 : index
    %23 = vector.load %arg2[%22, %c0_6] : memref<64x128xf32, #tpu.memory_space<vmem>>, vector<1x128xf32>
    %c3 = arith.constant 3 : index
    %c0_7 = arith.constant 0 : index
    %24 = vector.load %arg3[%c3, %c0_7] : memref<16x128xf32, #tpu.memory_space<vmem>>, vector<1x128xf32>
    tpu.vector_store %arg3[%c3, %c0_7], %23 {strides = array<i32>} : memref<16x128xf32, #tpu.memory_space<vmem>>, vector<1x128xf32>,
    %c4_i32 = arith.constant 4 : i32
    %25 = arith.addi %0, %c4_i32 : i32
    %26 = arith.index_cast %25 : i32 to index
    %27 = memref.load %arg1[%26] : memref<16xi32, #tpu.memory_space<smem>>
    %28 = arith.index_cast %27 : i32 to index
    %c0_8 = arith.constant 0 : index
    %29 = vector.load %arg2[%28, %c0_8] : memref<64x128xf32, #tpu.memory_space<vmem>>, vector<1x128xf32>
    %c4 = arith.constant 4 : index
    %c0_9 = arith.constant 0 : index
    %30 = vector.load %arg3[%c4, %c0_9] : memref<16x128xf32, #tpu.memory_space<vmem>>, vector<1x128xf32>
    tpu.vector_store %arg3[%c4, %c0_9], %29 {strides = array<i32>} : memref<16x128xf32, #tpu.memory_space<vmem>>, vector<1x128xf32>,
    %c5_i32 = arith.constant 5 : i32
    %31 = arith.addi %0, %c5_i32 : i32
    %32 = arith.index_cast %31 : i32 to index
    %33 = memref.load %arg1[%32] : memref<16xi32, #tpu.memory_space<smem>>
    %34 = arith.index_cast %33 : i32 to index
    %c0_10 = arith.constant 0 : index
    %35 = vector.load %arg2[%34, %c0_10] : memref<64x128xf32, #tpu.memory_space<vmem>>, vector<1x128xf32>
    %c5 = arith.constant 5 : index
    %c0_11 = arith.constant 0 : index
    %36 = vector.load %arg3[%c5, %c0_11] : memref<16x128xf32, #tpu.memory_space<vmem>>, vector<1x128xf32>
    tpu.vector_store %arg3[%c5, %c0_11], %35 {strides = array<i32>} : memref<16x128xf32, #tpu.memory_space<vmem>>, vector<1x128xf32>,
    %c6_i32 = arith.constant 6 : i32
    %37 = arith.addi %0, %c6_i32 : i32
    %38 = arith.index_cast %37 : i32 to index
    %39 = memref.load %arg1[%38] : memref<16xi32, #tpu.memory_space<smem>>
    %40 = arith.index_cast %39 : i32 to index
    %c0_12 = arith.constant 0 : index
    %41 = vector.load %arg2[%40, %c0_12] : memref<64x128xf32, #tpu.memory_space<vmem>>, vector<1x128xf32>
    %c6 = arith.constant 6 : index
    %c0_13 = arith.constant 0 : index
    %42 = vector.load %arg3[%c6, %c0_13] : memref<16x128xf32, #tpu.memory_space<vmem>>, vector<1x128xf32>
    tpu.vector_store %arg3[%c6, %c0_13], %41 {strides = array<i32>} : memref<16x128xf32, #tpu.memory_space<vmem>>, vector<1x128xf32>,
    %c7_i32 = arith.constant 7 : i32
    %43 = arith.addi %0, %c7_i32 : i32
    %44 = arith.index_cast %43 : i32 to index
    %45 = memref.load %arg1[%44] : memref<16xi32, #tpu.memory_space<smem>>
    %46 = arith.index_cast %45 : i32 to index
    %c0_14 = arith.constant 0 : index
    %47 = vector.load %arg2[%46, %c0_14] : memref<64x128xf32, #tpu.memory_space<vmem>>, vector<1x128xf32>
    %c7 = arith.constant 7 : index
    %c0_15 = arith.constant 0 : index
    %48 = vector.load %arg3[%c7, %c0_15] : memref<16x128xf32, #tpu.memory_space<vmem>>, vector<1x128xf32>
    tpu.vector_store %arg3[%c7, %c0_15], %47 {strides = array<i32>} : memref<16x128xf32, #tpu.memory_space<vmem>>, vector<1x128xf32>,
    %c8_i32 = arith.constant 8 : i32
    %49 = arith.addi %0, %c8_i32 : i32
    %50 = arith.index_cast %49 : i32 to index
    %51 = memref.load %arg1[%50] : memref<16xi32, #tpu.memory_space<smem>>
    %52 = arith.index_cast %51 : i32 to index
    %c0_16 = arith.constant 0 : index
    %53 = vector.load %arg2[%52, %c0_16] : memref<64x128xf32, #tpu.memory_space<vmem>>, vector<1x128xf32>
    %c8 = arith.constant 8 : index
    %c0_17 = arith.constant 0 : index
    %54 = vector.load %arg3[%c8, %c0_17] : memref<16x128xf32, #tpu.memory_space<vmem>>, vector<1x128xf32>
    tpu.vector_store %arg3[%c8, %c0_17], %53 {strides = array<i32>} : memref<16x128xf32, #tpu.memory_space<vmem>>, vector<1x128xf32>,
    %c9_i32 = arith.constant 9 : i32
    %55 = arith.addi %0, %c9_i32 : i32
    %56 = arith.index_cast %55 : i32 to index
    %57 = memref.load %arg1[%56] : memref<16xi32, #tpu.memory_space<smem>>
    %58 = arith.index_cast %57 : i32 to index
    %c0_18 = arith.constant 0 : index
    %59 = vector.load %arg2[%58, %c0_18] : memref<64x128xf32, #tpu.memory_space<vmem>>, vector<1x128xf32>
    %c9 = arith.constant 9 : index
    %c0_19 = arith.constant 0 : index
    %60 = vector.load %arg3[%c9, %c0_19] : memref<16x128xf32, #tpu.memory_space<vmem>>, vector<1x128xf32>
    tpu.vector_store %arg3[%c9, %c0_19], %59 {strides = array<i32>} : memref<16x128xf32, #tpu.memory_space<vmem>>, vector<1x128xf32>,
    %c10_i32 = arith.constant 10 : i32
    %61 = arith.addi %0, %c10_i32 : i32
    %62 = arith.index_cast %61 : i32 to index
    %63 = memref.load %arg1[%62] : memref<16xi32, #tpu.memory_space<smem>>
    %64 = arith.index_cast %63 : i32 to index
    %c0_20 = arith.constant 0 : index
    %65 = vector.load %arg2[%64, %c0_20] : memref<64x128xf32, #tpu.memory_space<vmem>>, vector<1x128xf32>
    %c10 = arith.constant 10 : index
    %c0_21 = arith.constant 0 : index
    %66 = vector.load %arg3[%c10, %c0_21] : memref<16x128xf32, #tpu.memory_space<vmem>>, vector<1x128xf32>
    tpu.vector_store %arg3[%c10, %c0_21], %65 {strides = array<i32>} : memref<16x128xf32, #tpu.memory_space<vmem>>, vector<1x128xf32>,
    %c11_i32 = arith.constant 11 : i32
    %67 = arith.addi %0, %c11_i32 : i32
    %68 = arith.index_cast %67 : i32 to index
    %69 = memref.load %arg1[%68] : memref<16xi32, #tpu.memory_space<smem>>
    %70 = arith.index_cast %69 : i32 to index
    %c0_22 = arith.constant 0 : index
    %71 = vector.load %arg2[%70, %c0_22] : memref<64x128xf32, #tpu.memory_space<vmem>>, vector<1x128xf32>
    %c11 = arith.constant 11 : index
    %c0_23 = arith.constant 0 : index
    %72 = vector.load %arg3[%c11, %c0_23] : memref<16x128xf32, #tpu.memory_space<vmem>>, vector<1x128xf32>
    tpu.vector_store %arg3[%c11, %c0_23], %71 {strides = array<i32>} : memref<16x128xf32, #tpu.memory_space<vmem>>, vector<1x128xf32>,
    %c12_i32 = arith.constant 12 : i32
    %73 = arith.addi %0, %c12_i32 : i32
    %74 = arith.index_cast %73 : i32 to index
    %75 = memref.load %arg1[%74] : memref<16xi32, #tpu.memory_space<smem>>
    %76 = arith.index_cast %75 : i32 to index
    %c0_24 = arith.constant 0 : index
    %77 = vector.load %arg2[%76, %c0_24] : memref<64x128xf32, #tpu.memory_space<vmem>>, vector<1x128xf32>
    %c12 = arith.constant 12 : index
    %c0_25 = arith.constant 0 : index
    %78 = vector.load %arg3[%c12, %c0_25] : memref<16x128xf32, #tpu.memory_space<vmem>>, vector<1x128xf32>
    tpu.vector_store %arg3[%c12, %c0_25], %77 {strides = array<i32>} : memref<16x128xf32, #tpu.memory_space<vmem>>, vector<1x128xf32>,
    %c13_i32 = arith.constant 13 : i32
    %79 = arith.addi %0, %c13_i32 : i32
    %80 = arith.index_cast %79 : i32 to index
    %81 = memref.load %arg1[%80] : memref<16xi32, #tpu.memory_space<smem>>
    %82 = arith.index_cast %81 : i32 to index
    %c0_26 = arith.constant 0 : index
    %83 = vector.load %arg2[%82, %c0_26] : memref<64x128xf32, #tpu.memory_space<vmem>>, vector<1x128xf32>
    %c13 = arith.constant 13 : index
    %c0_27 = arith.constant 0 : index
    %84 = vector.load %arg3[%c13, %c0_27] : memref<16x128xf32, #tpu.memory_space<vmem>>, vector<1x128xf32>
    tpu.vector_store %arg3[%c13, %c0_27], %83 {strides = array<i32>} : memref<16x128xf32, #tpu.memory_space<vmem>>, vector<1x128xf32>,
    %c14_i32 = arith.constant 14 : i32
    %85 = arith.addi %0, %c14_i32 : i32
    %86 = arith.index_cast %85 : i32 to index
    %87 = memref.load %arg1[%86] : memref<16xi32, #tpu.memory_space<smem>>
    %88 = arith.index_cast %87 : i32 to index
    %c0_28 = arith.constant 0 : index
    %89 = vector.load %arg2[%88, %c0_28] : memref<64x128xf32, #tpu.memory_space<vmem>>, vector<1x128xf32>
    %c14 = arith.constant 14 : index
    %c0_29 = arith.constant 0 : index
    %90 = vector.load %arg3[%c14, %c0_29] : memref<16x128xf32, #tpu.memory_space<vmem>>, vector<1x128xf32>
    tpu.vector_store %arg3[%c14, %c0_29], %89 {strides = array<i32>} : memref<16x128xf32, #tpu.memory_space<vmem>>, vector<1x128xf32>,
    %c15_i32 = arith.constant 15 : i32
    %91 = arith.addi %0, %c15_i32 : i32
    %92 = arith.index_cast %91 : i32 to index
    %93 = memref.load %arg1[%92] : memref<16xi32, #tpu.memory_space<smem>>
    %94 = arith.index_cast %93 : i32 to index
    %c0_30 = arith.constant 0 : index
    %95 = vector.load %arg2[%94, %c0_30] : memref<64x128xf32, #tpu.memory_space<vmem>>, vector<1x128xf32>
    %c15 = arith.constant 15 : index
    %c0_31 = arith.constant 0 : index
    %96 = vector.load %arg3[%c15, %c0_31] : memref<16x128xf32, #tpu.memory_space<vmem>>, vector<1x128xf32>
    tpu.vector_store %arg3[%c15, %c0_31], %95 {strides = array<i32>} : memref<16x128xf32, #tpu.memory_space<vmem>>, vector<1x128xf32>,
    return
  }
  func.func @transform_0(%arg0: i32, %arg1: memref<16xi32, #tpu.memory_space<smem>>) -> (i32, i32) {
    %c0_i32 = arith.constant 0 : i32
    %c0_i32_0 = arith.constant 0 : i32
    %c0_i32_1 = arith.constant 0 : i32
    return %c0_i32, %c0_i32_0 : i32, i32
  }
  func.func @transform_1(%arg0: i32, %arg1: memref<16xi32, #tpu.memory_space<smem>>) -> (i32, i32) {
    %c0_i32 = arith.constant 0 : i32
    %c0_i32_0 = arith.constant 0 : i32
    return %arg0, %c0_i32 : i32, i32
  }
}

</mosaic_0001>

<llo_original>
// kernel: embedding_lookup.1
$region0: #{embedding_lookup.1}
  #allocation0 [shape = 'u32[]', space=smem, size = 0x4, offset = 0x4, fixed_abs, tag = 'smem constant byte address 0x4 - core index']
  #allocation1 [shape = 'u32[144,128]{1,0:T(1,128)}', space=vmem, size = 0x12000, scoped, tag = 'internal scratch']
  #allocation2 [shape = 's32[1]{0}', space=sflag, size = 0x4, scoped, tag = 'scoped memory for embedding_lookup.1']
  #allocation3 [shape = 'u8[512]{0}', space=smem, size = 0x200, scoped, tag = 'prefetched SMEM operand 0']
  %s0 = inlined_call_operand.vmem [shape: s32[16], index: 0, kind: input, shape index: {}]
  %s1 = inlined_call_operand.hbm [shape: f32[64,128], index: 1, kind: input, shape index: {}]
  %s2 = inlined_call_operand.vmem [shape: f32[16,128], index: 2, kind: output, shape index: {}]
  %s3 = sld [smem:[#allocation0]]
  $region18: #{embedding_lookup.1} parent=0
    _
  %s5 = ssub.s32 1, %s3
  %s6 = scalar_select 0, %s5, %s3
  %s7 = sshll.u32 %s0, 4
  %s8 = int_to_ptr.vmem [resolvable:$true] %s7
  %10 = dma.vmem_to_smem %s8, 16, [#allocation3], [#allocation2]
  %11 = dma.done [#allocation2], 16
  %12 = sfence
  $region1: #{embedding_lookup.1} parent=0
    #allocation4 [shape = 'u8[32768]{0}', space=vmem, size = 0x8000, scoped, tag = 'input window, operand 1, single buffered']
    #allocation5 [shape = 's32[1]{0}', space=sflag, size = 0x4, scoped, tag = 'scoped memory for embedding_lookup.1']
    %13 = vsyncpa [#allocation5], 0
    // Predicated region
    $region2: #{embedding_lookup.1} parent=1 // pred_check
      _
    $region3: #{embedding_lookup.1} parent=1 // pred_check_branch
      %15 = sbr.rel (0) target = $region5
    $region4: #{embedding_lookup.1} parent=1 // pred_region
      %s17 = ssub.s32 1024, 1024
      %18 = vsyncadd [#allocation5], %s17
      %s19 = sshll.u32 [#allocation4], 4
      %s20 = int_to_ptr.vmem [resolvable:$true] %s19
      %25 = dma.hbm_to_vmem [thread:$0]  %s1, 1024, %s20, [#allocation5], 128, 128, 8
    $region5: #{embedding_lookup.1} parent=1 // pred_fallthru
      _
    // Predicated region
    $region6: #{embedding_lookup.1} parent=1 // pred_check
      _
    $region7: #{embedding_lookup.1} parent=1 // pred_check_branch
      %27 = sbr.rel (0) target = $region9
    $region8: #{embedding_lookup.1} parent=1 // pred_region
      %28 = dma.done [#allocation5], 1024
    $region9: #{embedding_lookup.1} parent=1 // pred_fallthru
      _
    %s29 = smul.u32 0, 16
    %s30 = sld [smem:[#allocation3 + %s29]]
    %s31 = scalar_lea.vmem [#allocation4], %s30
    %v32 = vld [vmem:[%s31] sm:$0x1]
    %33 = vst [vmem:[%s2] sm:$0x1] %v32
    %s34 = sadd.s32 %s29, 1
    %s35 = sld [smem:[#allocation3 + %s34]]
    %s36 = scalar_lea.vmem [#allocation4], %s35
    %v37 = vld [vmem:[%s36] sm:$0x1]
    %38 = vst [vmem:[%s2 + $0x1] sm:$0x1] %v37
    %s39 = sadd.s32 %s29, 2
    %s40 = sld [smem:[#allocation3 + %s39]]
    %s41 = scalar_lea.vmem [#allocation4], %s40
    %v42 = vld [vmem:[%s41] sm:$0x1]
    %43 = vst [vmem:[%s2 + $0x2] sm:$0x1] %v42
    %s44 = sadd.s32 %s29, 3
    %s45 = sld [smem:[#allocation3 + %s44]]
    %s46 = scalar_lea.vmem [#allocation4], %s45
    %v47 = vld [vmem:[%s46] sm:$0x1]
    %48 = vst [vmem:[%s2 + $0x3] sm:$0x1] %v47
    %s49 = sadd.s32 %s29, 4
    %s50 = sld [smem:[#allocation3 + %s49]]
    %s51 = scalar_lea.vmem [#allocation4], %s50
    %v52 = vld [vmem:[%s51] sm:$0x1]
    %53 = vst [vmem:[%s2 + $0x4] sm:$0x1] %v52
    %s54 = sadd.s32 %s29, 5
    %s55 = sld [smem:[#allocation3 + %s54]]
    %s56 = scalar_lea.vmem [#allocation4], %s55
    %v57 = vld [vmem:[%s56] sm:$0x1]
    %58 = vst [vmem:[%s2 + $0x5] sm:$0x1] %v57
    %s59 = sadd.s32 %s29, 6
    %s60 = sld [smem:[#allocation3 + %s59]]
    %s61 = scalar_lea.vmem [#allocation4], %s60
    %v62 = vld [vmem:[%s61] sm:$0x1]
    %63 = vst [vmem:[%s2 + $0x6] sm:$0x1] %v62
    %s64 = sadd.s32 %s29, 7
    %s65 = sld [smem:[#allocation3 + %s64]]
    %s66 = scalar_lea.vmem [#allocation4], %s65
    %v67 = vld [vmem:[%s66] sm:$0x1]
    %68 = vst [vmem:[%s2 + $0x7] sm:$0x1] %v67
    %s69 = sadd.s32 %s29, 8
    %s70 = sld [smem:[#allocation3 + %s69]]
    %s71 = scalar_lea.vmem [#allocation4], %s70
    %v72 = vld [vmem:[%s71] sm:$0x1]
    %73 = vst [vmem:[%s2 + $0x8] sm:$0x1] %v72
    %s74 = sadd.s32 %s29, 9
    %s75 = sld [smem:[#allocation3 + %s74]]
    %s76 = scalar_lea.vmem [#allocation4], %s75
    %v77 = vld [vmem:[%s76] sm:$0x1]
    %78 = vst [vmem:[%s2 + $0x9] sm:$0x1] %v77
    %s79 = sadd.s32 %s29, 10
    %s80 = sld [smem:[#allocation3 + %s79]]
    %s81 = scalar_lea.vmem [#allocation4], %s80
    %v82 = vld [vmem:[%s81] sm:$0x1]
    %83 = vst [vmem:[%s2 + $0xa] sm:$0x1] %v82
    %s84 = sadd.s32 %s29, 11
    %s85 = sld [smem:[#allocation3 + %s84]]
    %s86 = scalar_lea.vmem [#allocation4], %s85
    %v87 = vld [vmem:[%s86] sm:$0x1]
    %88 = vst [vmem:[%s2 + $0xb] sm:$0x1] %v87
    %s89 = sadd.s32 %s29, 12
    %s90 = sld [smem:[#allocation3 + %s89]]
    %s91 = scalar_lea.vmem [#allocation4], %s90
    %v92 = vld [vmem:[%s91] sm:$0x1]
    %93 = vst [vmem:[%s2 + $0xc] sm:$0x1] %v92
    %s94 = sadd.s32 %s29, 13
    %s95 = sld [smem:[#allocation3 + %s94]]
    %s96 = scalar_lea.vmem [#allocation4], %s95
    %v97 = vld [vmem:[%s96] sm:$0x1]
    %98 = vst [vmem:[%s2 + $0xd] sm:$0x1] %v97
    %s99 = sadd.s32 %s29, 14
    %s100 = sld [smem:[#allocation3 + %s99]]
    %s101 = scalar_lea.vmem [#allocation4], %s100
    %v102 = vld [vmem:[%s101] sm:$0x1]
    %103 = vst [vmem:[%s2 + $0xe] sm:$0x1] %v102
    %s104 = sadd.s32 %s29, 15
    %s105 = sld [smem:[#allocation3 + %s104]]
    %s106 = scalar_lea.vmem [#allocation4], %s105
    %v107 = vld [vmem:[%s106] sm:$0x1]
    %108 = vst [vmem:[%s2 + $0xf] sm:$0x1] %v107
    // Predicated region
    $region10: #{embedding_lookup.1} parent=1 // pred_check
      _
    $region11: #{embedding_lookup.1} parent=1 // pred_check_branch
      %110 = sbr.rel (0) target = $region13
    $region12: #{embedding_lookup.1} parent=1 // pred_region
      _
    $region13: #{embedding_lookup.1} parent=1 // pred_fallthru
      _
    // Predicated region
    $region14: #{embedding_lookup.1} parent=1 // pred_check
      _
    $region15: #{embedding_lookup.1} parent=1 // pred_check_branch
      %112 = sbr.rel (0) target = $region17
    $region16: #{embedding_lookup.1} parent=1 // pred_region
      _
    $region17: #{embedding_lookup.1} parent=1 // pred_fallthru
      _
    %113 = vsyncpa [#allocation5], 1

</llo_original>
